<compile_context>
chip_gen: v7x
topology: tpu7x:2x2x1
jax: 0.10.0
libtpu: 0.0.40
codegen_flags: <defaults>
</compile_context>

<pallas_src>
import functools

import jax
import jax.numpy as jnp
from jax.experimental import pallas as pl
from jax.experimental.pallas import tpu as pltpu


D_IN, D_H1, D_H2, D_OUT = 10, 20, 15, 5


def _round_up(n, m):
    return ((n + m - 1) // m) * m


def _mlp_kernel(x_ref, w1_ref, b1_ref, w2_ref, b2_ref, w3_ref, b3_ref, o_ref):
    # x_ref: (10, TILE_B) bf16 — batch on the lane axis.
    # wN_ref: (out, in) bf16 (PyTorch layout).  bN_ref: (out, 1) f32.
    x = x_ref[...]

    # layer1: Linear(10 -> 20) + ReLU      -> (20, TILE_B) f32
    h1 = jnp.dot(w1_ref[...], x, preferred_element_type=jnp.float32)
    h1 = jnp.maximum(h1 + b1_ref[...], 0.0)

    # layer2: Linear(20 -> 15) + ReLU      -> (15, TILE_B) f32
    h2 = jnp.dot(w2_ref[...], h1.astype(jnp.bfloat16),
                 preferred_element_type=jnp.float32)
    h2 = jnp.maximum(h2 + b2_ref[...], 0.0)

    # layer3: Linear(15 -> 5) + Sigmoid    -> (5, TILE_B) f32
    z = jnp.dot(w3_ref[...], h2.astype(jnp.bfloat16),
                preferred_element_type=jnp.float32)
    z = z + b3_ref[...]
    o_ref[...] = jax.nn.sigmoid(z).astype(o_ref.dtype)


@functools.partial(jax.jit, static_argnames=("tile_b",))
def my_own_nn_forward(x, params, *, tile_b=8192):
    """Fused MLP forward.  x: (B, 10) float32; params in PyTorch (out,in) layout."""
    w1, b1, w2, b2, w3, b3 = params
    B = x.shape[0]

    # Batch maps to the lane axis -> work in 128-lane units.  Pick the number
    # of tiles first, then the tile size, so batch padding stays small even
    # when B is not near a multiple of tile_b.
    b128 = _round_up(max(B, 1), 128)
    n_tiles = pl.cdiv(b128, tile_b)
    tb = _round_up(pl.cdiv(b128, n_tiles), 128)
    b_pad = n_tiles * tb
    grid = (n_tiles,)

    # Layout plumbing in the wrapper: pad batch, transpose to (features, B),
    # cast matmul operands to bf16 (f32 accumulation inside the kernel).
    xp = jnp.pad(x, ((0, b_pad - B), (0, 0)))
    x_t = xp.T.astype(jnp.bfloat16)                        # (10, B_pad)

    w1b = w1.astype(jnp.bfloat16)                          # (20, 10)
    w2b = w2.astype(jnp.bfloat16)                          # (15, 20)
    w3b = w3.astype(jnp.bfloat16)                          # (5, 15)
    b1c = b1.reshape(D_H1, 1).astype(jnp.float32)
    b2c = b2.reshape(D_H2, 1).astype(jnp.float32)
    b3c = b3.reshape(D_OUT, 1).astype(jnp.float32)

    flops = 2 * b_pad * (D_IN * D_H1 + D_H1 * D_H2 + D_H2 * D_OUT)
    bytes_accessed = (
        x_t.size * 2 + b_pad * D_OUT * 4
        + (w1b.size + w2b.size + w3b.size) * 2
        + (b1c.size + b2c.size + b3c.size) * 4
    )

    def full_spec(arr):
        # whole array every step -> stays VMEM-resident across the batch grid
        return pl.BlockSpec(arr.shape, lambda i: (0, 0))

    out_t = pl.pallas_call(
        _mlp_kernel,
        out_shape=jax.ShapeDtypeStruct((D_OUT, b_pad), jnp.float32),
        grid=grid,
        in_specs=[
            pl.BlockSpec((D_IN, tb), lambda i: (0, i)),    # x tile (batch on lanes)
            full_spec(w1b), full_spec(b1c),
            full_spec(w2b), full_spec(b2c),
            full_spec(w3b), full_spec(b3c),
        ],
        out_specs=pl.BlockSpec((D_OUT, tb), lambda i: (0, i)),
        compiler_params=pltpu.CompilerParams(
            dimension_semantics=("parallel",)),
        cost_estimate=pl.CostEstimate(
            flops=int(flops),
            transcendentals=int(b_pad * D_OUT),
            bytes_accessed=int(bytes_accessed)),
    )(x_t, w1b, b1c, w2b, b2c, w3b, b3c)

    # Back to the PyTorch (B, 5) convention; drop batch padding.
    return out_t.T[:B]


def init_params(key):
    """torch.nn.Linear-style init: uniform(+/- 1/sqrt(fan_in)), (out, in) layout."""
    dims = [(D_IN, D_H1), (D_H1, D_H2), (D_H2, D_OUT)]
    params = []
    for fan_in, fan_out in dims:
        key, kw, kb = jax.random.split(key, 3)
        bound = 1.0 / jnp.sqrt(float(fan_in))
        w = jax.random.uniform(kw, (fan_out, fan_in), jnp.float32, -bound, bound)
        b = jax.random.uniform(kb, (fan_out,), jnp.float32, -bound, bound)
        params.extend([w, b])
    return tuple(params)


def reference_forward(x, params):
    """Plain-JAX reference mirroring the kernel's bf16-input / f32-accum math."""
    w1, b1, w2, b2, w3, b3 = params
    bf = jnp.bfloat16
    h1 = jnp.maximum(
        jnp.dot(x.astype(bf), w1.astype(bf).T,
                preferred_element_type=jnp.float32) + b1, 0.0)
    h2 = jnp.maximum(
        jnp.dot(h1.astype(bf), w2.astype(bf).T,
                preferred_element_type=jnp.float32) + b2, 0.0)
    z = jnp.dot(h2.astype(bf), w3.astype(bf).T,
                preferred_element_type=jnp.float32) + b3
    return jax.nn.sigmoid(z)


if __name__ == "__main__":
    key = jax.random.PRNGKey(0)
    key, kx = jax.random.split(key)

    B = 8  # small demo batch (kernel is designed for B in the thousands)
    x = jax.random.normal(kx, (B, D_IN), jnp.float32)
    params = init_params(key)

    out = my_own_nn_forward(x, params)
    out = jax.block_until_ready(out)

    ref = reference_forward(x, params)
    assert out.shape == (B, D_OUT)
    assert bool(jnp.all(jnp.isfinite(out)))
    assert jnp.allclose(out, ref, atol=1e-2, rtol=1e-2)

    print("KERNEL_OK")
</pallas_src>

<mosaic_0001>
module attributes {stable_mosaic.version = 11 : i64} {
  func.func @_mlp_kernel(%arg0: i32, %arg1: memref<10x128xbf16, #tpu.memory_space<vmem>>, %arg2: memref<20x10xbf16, #tpu.memory_space<vmem>>, %arg3: memref<20x1xf32, #tpu.memory_space<vmem>>, %arg4: memref<15x20xbf16, #tpu.memory_space<vmem>>, %arg5: memref<15x1xf32, #tpu.memory_space<vmem>>, %arg6: memref<5x15xbf16, #tpu.memory_space<vmem>>, %arg7: memref<5x1xf32, #tpu.memory_space<vmem>>, %arg8: memref<5x128xf32, #tpu.memory_space<vmem>>) attributes {dimension_semantics = [#tpu.dimension_semantics<parallel>], iteration_bounds = array<i64: 1>, scalar_prefetch = 0 : i64, scratch_operands = 0 : i64, tpu.core_type = #tpu.core_type<tc>, window_params = [{transform_indices = @transform_0, window_bounds = array<i64: 10, 128>}, {pipeline_mode = #tpu.pipeline_mode<synchronous>, transform_indices = @transform_1, window_bounds = array<i64: 20, 10>}, {pipeline_mode = #tpu.pipeline_mode<synchronous>, transform_indices = @transform_2, window_bounds = array<i64: 20, 1>}, {pipeline_mode = #tpu.pipeline_mode<synchronous>, transform_indices = @transform_3, window_bounds = array<i64: 15, 20>}, {pipeline_mode = #tpu.pipeline_mode<synchronous>, transform_indices = @transform_4, window_bounds = array<i64: 15, 1>}, {pipeline_mode = #tpu.pipeline_mode<synchronous>, transform_indices = @transform_5, window_bounds = array<i64: 5, 15>}, {pipeline_mode = #tpu.pipeline_mode<synchronous>, transform_indices = @transform_6, window_bounds = array<i64: 5, 1>}, {transform_indices = @transform_7, window_bounds = array<i64: 5, 128>}]} {
    %c0 = arith.constant 0 : index
    %c0_0 = arith.constant 0 : index
    %0 = vector.load %arg1[%c0, %c0_0] : memref<10x128xbf16, #tpu.memory_space<vmem>>, vector<10x128xbf16>
    %c0_1 = arith.constant 0 : index
    %c0_2 = arith.constant 0 : index
    %1 = vector.load %arg2[%c0_1, %c0_2] : memref<20x10xbf16, #tpu.memory_space<vmem>>, vector<20x10xbf16>
    %cst = arith.constant dense<0.000000e+00> : vector<20x128xf32>
    %2 = tpu.matmul %1, %0, %cst {dimension_numbers = #tpu.dot_dimension_numbers<[1], [0], [0], [1], [0, 0, 1, 1], [], []>} : vector<20x10xbf16>, vector<10x128xbf16>, vector<20x128xf32> -> vector<20x128xf32>
    %c0_3 = arith.constant 0 : index
    %c0_4 = arith.constant 0 : index
    %3 = vector.load %arg3[%c0_3, %c0_4] : memref<20x1xf32, #tpu.memory_space<vmem>>, vector<20x1xf32>
    %4 = vector.broadcast %3 : vector<20x1xf32> to vector<20x128xf32>
    %5 = arith.addf %2, %4 : vector<20x128xf32>
    %cst_5 = arith.constant 0.000000e+00 : f32
    %6 = vector.broadcast %cst_5 : f32 to vector<20x128xf32>
    %7 = arith.maximumf %5, %6 : vector<20x128xf32>
    %c0_6 = arith.constant 0 : index
    %c0_7 = arith.constant 0 : index
    %8 = vector.load %arg4[%c0_6, %c0_7] : memref<15x20xbf16, #tpu.memory_space<vmem>>, vector<15x20xbf16>
    %9 = arith.truncf %7 : vector<20x128xf32> to vector<20x128xbf16>
    %cst_8 = arith.constant dense<0.000000e+00> : vector<15x128xf32>
    %10 = tpu.matmul %8, %9, %cst_8 {dimension_numbers = #tpu.dot_dimension_numbers<[1], [0], [0], [1], [0, 0, 1, 1], [], []>} : vector<15x20xbf16>, vector<20x128xbf16>, vector<15x128xf32> -> vector<15x128xf32>
    %c0_9 = arith.constant 0 : index
    %c0_10 = arith.constant 0 : index
    %11 = vector.load %arg5[%c0_9, %c0_10] : memref<15x1xf32, #tpu.memory_space<vmem>>, vector<15x1xf32>
    %12 = vector.broadcast %11 : vector<15x1xf32> to vector<15x128xf32>
    %13 = arith.addf %10, %12 : vector<15x128xf32>
    %cst_11 = arith.constant 0.000000e+00 : f32
    %14 = vector.broadcast %cst_11 : f32 to vector<15x128xf32>
    %15 = arith.maximumf %13, %14 : vector<15x128xf32>
    %c0_12 = arith.constant 0 : index
    %c0_13 = arith.constant 0 : index
    %16 = vector.load %arg6[%c0_12, %c0_13] : memref<5x15xbf16, #tpu.memory_space<vmem>>, vector<5x15xbf16>
    %17 = arith.truncf %15 : vector<15x128xf32> to vector<15x128xbf16>
    %cst_14 = arith.constant dense<0.000000e+00> : vector<5x128xf32>
    %18 = tpu.matmul %16, %17, %cst_14 {dimension_numbers = #tpu.dot_dimension_numbers<[1], [0], [0], [1], [0, 0, 1, 1], [], []>} : vector<5x15xbf16>, vector<15x128xbf16>, vector<5x128xf32> -> vector<5x128xf32>
    %c0_15 = arith.constant 0 : index
    %c0_16 = arith.constant 0 : index
    %19 = vector.load %arg7[%c0_15, %c0_16] : memref<5x1xf32, #tpu.memory_space<vmem>>, vector<5x1xf32>
    %20 = vector.broadcast %19 : vector<5x1xf32> to vector<5x128xf32>
    %21 = arith.addf %18, %20 : vector<5x128xf32>
    %22 = arith.negf %21 : vector<5x128xf32>
    %23 = math.exp %22 : vector<5x128xf32>
    %cst_17 = arith.constant 1.000000e+00 : f32
    %24 = vector.broadcast %cst_17 : f32 to vector<5x128xf32>
    %25 = arith.addf %24, %23 : vector<5x128xf32>
    %26 = arith.divf %24, %25 : vector<5x128xf32>
    %c0_18 = arith.constant 0 : index
    %c0_19 = arith.constant 0 : index
    %27 = vector.load %arg8[%c0_18, %c0_19] : memref<5x128xf32, #tpu.memory_space<vmem>>, vector<5x128xf32>
    tpu.vector_store %arg8[%c0_18, %c0_19], %26 {strides = array<i32>} : memref<5x128xf32, #tpu.memory_space<vmem>>, vector<5x128xf32>,
    return
  }
  func.func @transform_0(%arg0: i32) -> (i32, i32) {
    %c0_i32 = arith.constant 0 : i32
    %c0_i32_0 = arith.constant 0 : i32
    return %c0_i32, %arg0 : i32, i32
  }
  func.func @transform_1(%arg0: i32) -> (i32, i32) {
    %c0_i32 = arith.constant 0 : i32
    %c0_i32_0 = arith.constant 0 : i32
    %c0_i32_1 = arith.constant 0 : i32
    return %c0_i32, %c0_i32_0 : i32, i32
  }
  func.func @transform_2(%arg0: i32) -> (i32, i32) {
    %c0_i32 = arith.constant 0 : i32
    %c0_i32_0 = arith.constant 0 : i32
    %c0_i32_1 = arith.constant 0 : i32
    return %c0_i32, %c0_i32_0 : i32, i32
  }
  func.func @transform_3(%arg0: i32) -> (i32, i32) {
    %c0_i32 = arith.constant 0 : i32
    %c0_i32_0 = arith.constant 0 : i32
    %c0_i32_1 = arith.constant 0 : i32
    return %c0_i32, %c0_i32_0 : i32, i32
  }
  func.func @transform_4(%arg0: i32) -> (i32, i32) {
    %c0_i32 = arith.constant 0 : i32
    %c0_i32_0 = arith.constant 0 : i32
    %c0_i32_1 = arith.constant 0 : i32
    return %c0_i32, %c0_i32_0 : i32, i32
  }
  func.func @transform_5(%arg0: i32) -> (i32, i32) {
    %c0_i32 = arith.constant 0 : i32
    %c0_i32_0 = arith.constant 0 : i32
    %c0_i32_1 = arith.constant 0 : i32
    return %c0_i32, %c0_i32_0 : i32, i32
  }
  func.func @transform_6(%arg0: i32) -> (i32, i32) {
    %c0_i32 = arith.constant 0 : i32
    %c0_i32_0 = arith.constant 0 : i32
    %c0_i32_1 = arith.constant 0 : i32
    return %c0_i32, %c0_i32_0 : i32, i32
  }
  func.func @transform_7(%arg0: i32) -> (i32, i32) {
    %c0_i32 = arith.constant 0 : i32
    %c0_i32_0 = arith.constant 0 : i32
    return %c0_i32, %arg0 : i32, i32
  }
}

</mosaic_0001>

<llo_original>
// kernel: my_own_nn_forward.1
$region0: #{my_own_nn_forward.1}
  #allocation0 [shape = 'u32[]', space=smem, size = 0x4, offset = 0x4, fixed_abs, tag = 'smem constant byte address 0x4 - core index']
  #allocation1 [shape = 'u32[144,128]{1,0:T(1,128)}', space=vmem, size = 0x12000, scoped, tag = 'internal scratch']
  %s0 = inlined_call_operand.vmem [shape: bf16[10,128], index: 0, kind: input, shape index: {}]
  %s1 = inlined_call_operand.vmem [shape: bf16[20,10], index: 1, kind: input, shape index: {}]
  %s2 = inlined_call_operand.vmem [shape: f32[20,1], index: 2, kind: input, shape index: {}]
  %s3 = inlined_call_operand.vmem [shape: bf16[15,20], index: 3, kind: input, shape index: {}]
  %s4 = inlined_call_operand.vmem [shape: f32[15,1], index: 4, kind: input, shape index: {}]
  %s5 = inlined_call_operand.vmem [shape: bf16[5,15], index: 5, kind: input, shape index: {}]
  %s6 = inlined_call_operand.vmem [shape: f32[5,1], index: 6, kind: input, shape index: {}]
  %s7 = inlined_call_operand.vmem [shape: f32[5,128], index: 7, kind: output, shape index: {}]
  %s8 = sld [smem:[#allocation0]]
  $region38: #{my_own_nn_forward.1} parent=0
    _
  %s10 = ssub.s32 1, %s8
  %s11 = scalar_select 0, %s10, %s8
  // Predicated region
  $region2: #{my_own_nn_forward.1} parent=0 // pred_check
    _
  $region3: #{my_own_nn_forward.1} parent=0 // pred_check_branch
    %13 = sbr.rel (0) target = $region5
  $region4: #{my_own_nn_forward.1} parent=0 // pred_region
    _
  $region5: #{my_own_nn_forward.1} parent=0 // pred_fallthru
    _
  // Predicated region
  $region6: #{my_own_nn_forward.1} parent=0 // pred_check
    _
  $region7: #{my_own_nn_forward.1} parent=0 // pred_check_branch
    %15 = sbr.rel (0) target = $region9
  $region8: #{my_own_nn_forward.1} parent=0 // pred_region
    _
  $region9: #{my_own_nn_forward.1} parent=0 // pred_fallthru
    _
  // Predicated region
  $region10: #{my_own_nn_forward.1} parent=0 // pred_check
    _
  $region11: #{my_own_nn_forward.1} parent=0 // pred_check_branch
    %17 = sbr.rel (0) target = $region13
  $region12: #{my_own_nn_forward.1} parent=0 // pred_region
    _
  $region13: #{my_own_nn_forward.1} parent=0 // pred_fallthru
    _
  // Predicated region
  $region14: #{my_own_nn_forward.1} parent=0 // pred_check
    _
  $region15: #{my_own_nn_forward.1} parent=0 // pred_check_branch
    %19 = sbr.rel (0) target = $region17
  $region16: #{my_own_nn_forward.1} parent=0 // pred_region
    _
  $region17: #{my_own_nn_forward.1} parent=0 // pred_fallthru
    _
  // Predicated region
  $region18: #{my_own_nn_forward.1} parent=0 // pred_check
    _
  $region19: #{my_own_nn_forward.1} parent=0 // pred_check_branch
    %21 = sbr.rel (0) target = $region21
  $region20: #{my_own_nn_forward.1} parent=0 // pred_region
    _
  $region21: #{my_own_nn_forward.1} parent=0 // pred_fallthru
    _
  // Predicated region
  $region22: #{my_own_nn_forward.1} parent=0 // pred_check
    _
  $region23: #{my_own_nn_forward.1} parent=0 // pred_check_branch
    %23 = sbr.rel (0) target = $region25
  $region24: #{my_own_nn_forward.1} parent=0 // pred_region
    _
  $region25: #{my_own_nn_forward.1} parent=0 // pred_fallthru
    _
  // Predicated region
  $region26: #{my_own_nn_forward.1} parent=0 // pred_check
    _
  $region27: #{my_own_nn_forward.1} parent=0 // pred_check_branch
    %25 = sbr.rel (0) target = $region29
  $region28: #{my_own_nn_forward.1} parent=0 // pred_region
    _
  $region29: #{my_own_nn_forward.1} parent=0 // pred_fallthru
    _
  %v27 = vld [vmem:[%s0] sm:$0xf]
  %v28 = vld [vmem:[%s0 + $0x4] sm:$0x1]
  %v29 = vld [vmem:[%s1] sm:$0xf]
  %v30 = vld [vmem:[%s1 + $0x4] sm:$0xf]
  %v31 = vld [vmem:[%s1 + $0x8] sm:$0x3]
  %v32 = vld [vmem:[%s2] sm:$0xff]
  %v33 = vld [vmem:[%s2 + $0x8] sm:$0xff]
  %v34 = vld [vmem:[%s2 + $0x10] sm:$0xf]
  %36 = vset.pattern.permute.xlu0 0
  %37 = vperm.xlu0 %36, %v32
  %v38 = vpop.permute.xlu0 %37
  %41 = vset.pattern.permute.xlu0 0
  %42 = vperm.xlu0 %41, %v33
  %v43 = vpop.permute.xlu0 %42
  %46 = vset.pattern.permute.xlu0 0
  %47 = vperm.xlu0 %46, %v34
  %v48 = vpop.permute.xlu0 %47
  %v53 = vunpack.c.l.b16 %v29
  %v54 = vunpack.c.l.b16 %v30
  %v55 = vunpack.c.l.b16 %v31
  %v56 = vpack.c.b16 %v54, %v53
  %v57 = vpack.c.b16 %v55, %v55
  %v60 = vunpack.c.l.b16 %v27
  %v61 = vunpack.c.l.b16 %v28
  %v62 = vpack.c.b16 %v61, %v60
  %vm63 = vcmask 80896
  %v65 = vsel %vm63, %v56, 0
  %v68 = vsel %vm63, %v57, 0
  %vm70 = vcmask 1044480
  %v72 = vsel %vm70, %v62, 0
  %74 = vmatprep.subr.bf16.mxu0 0
  %75 = vmatpush1.bf16.msra.mxu0 %v72
  %76 = vmatprep.subr.bf16.mxu0 0
  %77 = vmatpush1.bf16.msra.mxu0 0
  %78 = vmatprep.subr.bf16.mxu0 0
  %79 = vmatpush1.bf16.msra.mxu0 0
  %80 = vmatprep.subr.bf16.mxu0 0
  %81 = vmatpush1.bf16.msra.mxu0 0
  %82 = vmatprep.subr.bf16.mxu0 0
  %83 = vmatpush1.bf16.msra.mxu0 0
  %84 = vmatprep.subr.bf16.mxu0 0
  %85 = vmatpush1.bf16.msra.mxu0 0
  %86 = vmatprep.subr.bf16.mxu0 0
  %87 = vmatpush1.bf16.msra.mxu0 0
  %88 = vmatprep.subr.bf16.mxu0 0
  %89 = vmatpush1.bf16.msra.mxu0 0
  %90 = vmatprep.subr.bf16.mxu0 0
  %91 = vmatpush1.bf16.msra.mxu0 0
  %92 = vmatprep.subr.bf16.mxu0 0
  %93 = vmatpush1.bf16.msra.mxu0 0
  %94 = vmatprep.subr.bf16.mxu0 0
  %95 = vmatpush1.bf16.msra.mxu0 0
  %96 = vmatprep.subr.bf16.mxu0 0
  %97 = vmatpush1.bf16.msra.mxu0 0
  %98 = vmatprep.subr.bf16.mxu0 0
  %99 = vmatpush1.bf16.msra.mxu0 0
  %100 = vmatprep.subr.bf16.mxu0 0
  %101 = vmatpush1.bf16.msra.mxu0 0
  %102 = vmatprep.subr.bf16.mxu0 0
  %103 = vmatpush1.bf16.msra.mxu0 0
  %104 = vmatprep.subr.bf16.mxu0 0
  %105 = vmatpush1.bf16.msra.mxu0 0
  %106 = vmatprep.mubr.bf16.mxu0 0
  %107 = vmatmul.mubr.bf16.gmra.mrb[0].mxu0 %v65
  %v108 = vpop.f32.mrb[0].mxu0
  %v109 = vadd.f32 %v38, %v108
  %v110 = vpop.f32.mrb[0].mxu0
  %v111 = vpop.f32.mrb[0].mxu0
  %v112 = vadd.f32 %v43, %v111
  %v113 = vpop.f32.mrb[0].mxu0
  %114 = vmatprep.mubr.bf16.mxu0 0
  %115 = vmatmul.mubr.bf16.gmra.mrb[0].mxu0 %v68
  %v116 = vpop.f32.mrb[0].mxu0
  %v117 = vadd.f32 %v48, %v116
  %v118 = vpop.f32.mrb[0].mxu0
  %v119 = vpop.f32.mrb[0].mxu0
  %v120 = vpop.f32.mrb[0].mxu0
  %121 = vdwg.mxu0
  %v122 = vmax.f32 %v109, 0.0
  %v123 = vmax.f32 %v112, 0.0
  %v124 = vmax.f32 %v117, 0.0
  %v125 = vld [vmem:[%s3] sm:$0xf]
  %v126 = vld [vmem:[%s3 + $0x4] sm:$0xf]
  %v127 = vpack.c.bf16 %v123, %v122
  %v128 = vpack.c.bf16 %v124, %v124
  %v129 = vld [vmem:[%s4] sm:$0xff]
  %v130 = vld [vmem:[%s4 + $0x8] sm:$0x7f]
  %132 = vset.pattern.permute.xlu0 0
  %133 = vperm.xlu0 %132, %v129
  %v134 = vpop.permute.xlu0 %133
  %137 = vset.pattern.permute.xlu0 0
  %138 = vperm.xlu0 %137, %v130
  %v139 = vpop.permute.xlu0 %138
  %v143 = vunpack.c.l.b16 %v125
  %v144 = vunpack.c.l.b16 %v126
  %v145 = vpack.c.b16 %v144, %v143
  %vm146 = vcmask 162816
  %v148 = vsel %vm146, %v145, 0
  %vm150 = vcmask 1041408
  %v152 = vsel %vm150, %v128, 0
  %154 = vmatprep.subr.bf16.mxu0 0
  %155 = vmatpush1.bf16.msra.mxu0 %v127
  %156 = vmatprep.subr.bf16.mxu0 0
  %157 = vmatpush1.bf16.msra.mxu0 %v152
  %158 = vmatprep.subr.bf16.mxu0 0
  %159 = vmatpush1.bf16.msra.mxu0 0
  %160 = vmatprep.subr.bf16.mxu0 0
  %161 = vmatpush1.bf16.msra.mxu0 0
  %162 = vmatprep.subr.bf16.mxu0 0
  %163 = vmatpush1.bf16.msra.mxu0 0
  %164 = vmatprep.subr.bf16.mxu0 0
  %165 = vmatpush1.bf16.msra.mxu0 0
  %166 = vmatprep.subr.bf16.mxu0 0
  %167 = vmatpush1.bf16.msra.mxu0 0
  %168 = vmatprep.subr.bf16.mxu0 0
  %169 = vmatpush1.bf16.msra.mxu0 0
  %170 = vmatprep.subr.bf16.mxu0 0
  %171 = vmatpush1.bf16.msra.mxu0 0
  %172 = vmatprep.subr.bf16.mxu0 0
  %173 = vmatpush1.bf16.msra.mxu0 0
  %174 = vmatprep.subr.bf16.mxu0 0
  %175 = vmatpush1.bf16.msra.mxu0 0
  %176 = vmatprep.subr.bf16.mxu0 0
  %177 = vmatpush1.bf16.msra.mxu0 0
  %178 = vmatprep.subr.bf16.mxu0 0
  %179 = vmatpush1.bf16.msra.mxu0 0
  %180 = vmatprep.subr.bf16.mxu0 0
  %181 = vmatpush1.bf16.msra.mxu0 0
  %182 = vmatprep.subr.bf16.mxu0 0
  %183 = vmatpush1.bf16.msra.mxu0 0
  %184 = vmatprep.subr.bf16.mxu0 0
  %185 = vmatpush1.bf16.msra.mxu0 0
  %186 = vmatprep.mubr.bf16.mxu0 0
  %187 = vmatmul.mubr.bf16.gmra.mrb[0].mxu0 %v148
  %v188 = vpop.f32.mrb[0].mxu0
  %v189 = vadd.f32 %v134, %v188
  %v190 = vpop.f32.mrb[0].mxu0
  %v191 = vpop.f32.mrb[0].mxu0
  %v192 = vadd.f32 %v139, %v191
  %v193 = vpop.f32.mrb[0].mxu0
  %194 = vdwg.mxu0
  %v195 = vmax.f32 %v189, 0.0
  %v196 = vmax.f32 %v192, 0.0
  %v197 = vld [vmem:[%s5] sm:$0x7]
  %v198 = vpack.c.bf16 %v196, %v195
  %v199 = vld [vmem:[%s6] sm:$0x1f]
  %201 = vset.pattern.permute.xlu0 0
  %202 = vperm.xlu0 %201, %v199
  %v203 = vpop.permute.xlu0 %202
  %vm205 = vcmask 121856
  %v207 = vsel %vm205, %v197, 0
  %vm209 = vcmask 1046528
  %vm210 = vcmask 1047552
  %v211 = vsel %vm209, 4294967295, 65535
  %v212 = vsel %vm210, %v211, 0
  %v214 = vand.u32 %v198, %v212
  %216 = vmatprep.subr.bf16.mxu0 0
  %217 = vmatpush1.bf16.msra.mxu0 %v214
  %218 = vmatprep.subr.bf16.mxu0 0
  %219 = vmatpush1.bf16.msra.mxu0 0
  %220 = vmatprep.subr.bf16.mxu0 0
  %221 = vmatpush1.bf16.msra.mxu0 0
  %222 = vmatprep.subr.bf16.mxu0 0
  %223 = vmatpush1.bf16.msra.mxu0 0
  %224 = vmatprep.subr.bf16.mxu0 0
  %225 = vmatpush1.bf16.msra.mxu0 0
  %226 = vmatprep.subr.bf16.mxu0 0
  %227 = vmatpush1.bf16.msra.mxu0 0
  %228 = vmatprep.subr.bf16.mxu0 0
  %229 = vmatpush1.bf16.msra.mxu0 0
  %230 = vmatprep.subr.bf16.mxu0 0
  %231 = vmatpush1.bf16.msra.mxu0 0
  %232 = vmatprep.subr.bf16.mxu0 0
  %233 = vmatpush1.bf16.msra.mxu0 0
  %234 = vmatprep.subr.bf16.mxu0 0
  %235 = vmatpush1.bf16.msra.mxu0 0
  %236 = vmatprep.subr.bf16.mxu0 0
  %237 = vmatpush1.bf16.msra.mxu0 0
  %238 = vmatprep.subr.bf16.mxu0 0
  %239 = vmatpush1.bf16.msra.mxu0 0
  %240 = vmatprep.subr.bf16.mxu0 0
  %241 = vmatpush1.bf16.msra.mxu0 0
  %242 = vmatprep.subr.bf16.mxu0 0
  %243 = vmatpush1.bf16.msra.mxu0 0
  %244 = vmatprep.subr.bf16.mxu0 0
  %245 = vmatpush1.bf16.msra.mxu0 0
  %246 = vmatprep.subr.bf16.mxu0 0
  %247 = vmatpush1.bf16.msra.mxu0 0
  %248 = vmatprep.mubr.bf16.mxu0 0
  %249 = vmatmul.mubr.bf16.gmra.mrb[0].mxu0 %v207
  %v250 = vpop.f32.mrb[0].mxu0
  %v251 = vadd.f32 %v203, %v250
  %v252 = vpop.f32.mrb[0].mxu0
  %v253 = vpop.f32.mrb[0].mxu0
  %v254 = vpop.f32.mrb[0].mxu0
  %255 = vdwg.mxu0
  %v256 = vxor.u32 %v251, 2147483648
  %v257 = vmul.f32 %v256, 1.442695
  %v258 = vpow.pop %v257
  %v259 = vadd.f32 %v258, 1.0
  %v260 = vrcp.pop %v259
  %v261 = vmul.f32 1.0, %v260
  %262 = vst [vmem:[%s7] sm:$0x1f] %v261
  // Predicated region
  $region30: #{my_own_nn_forward.1} parent=0 // pred_check
    _
  $region31: #{my_own_nn_forward.1} parent=0 // pred_check_branch
    %264 = sbr.rel (0) target = $region33
  $region32: #{my_own_nn_forward.1} parent=0 // pred_region
    _
  $region33: #{my_own_nn_forward.1} parent=0 // pred_fallthru
    _
  // Predicated region
  $region34: #{my_own_nn_forward.1} parent=0 // pred_check
    _
  $region35: #{my_own_nn_forward.1} parent=0 // pred_check_branch
    %266 = sbr.rel (0) target = $region37
  $region36: #{my_own_nn_forward.1} parent=0 // pred_region
    _
  $region37: #{my_own_nn_forward.1} parent=0 // pred_fallthru
    _

</llo_original>
